<compile_context>
chip_gen: v5e
topology: v5e:2x2
jax: 0.10.0
libtpu: 0.0.40
codegen_flags: <defaults>
</compile_context>

<pallas_src>
import functools
import numpy as np

import jax
import jax.numpy as jnp
from jax.experimental import pallas as pl
from jax.experimental.pallas import tpu as pltpu


# ----------------------------------- kernel ------------------------------------

def _frequency_layer_kernel(x_ref, wt_ref, o_ref, *, compute_dtype):
    """One row tile: out = x @ W^T  (f32 accumulation on the MXU).

    x_ref : (bm, D)  tile of flattened (B*S, D) activations
    wt_ref: (D, D)   W^T, resident in VMEM, already in compute_dtype
    o_ref : (bm, D)
    """
    x = x_ref[...].astype(compute_dtype)
    o_ref[...] = jnp.dot(
        x, wt_ref[...], preferred_element_type=jnp.float32
    ).astype(o_ref.dtype)


# ---------------------------------- wrapper -------------------------------------

def frequency_layer(x, weight, *, block_rows: int = 512, compute_dtype=jnp.float32):
    """Pallas implementation of FrequencyLayer.forward.

    x:      (B, S, D) float32
    weight: (D, D)    float32  (the nn.Parameter; applied as F.linear -> x @ W^T)
    """
    B, S, D = x.shape
    assert weight.shape == (D, D), weight.shape

    m_rows = B * S
    x2 = x.reshape(m_rows, D)                       # layout-free leading-dim merge
    wt = jnp.asarray(weight, compute_dtype).T       # pre-cast once, resident block

    # --- pick the row tile: divisor of m_rows (no pad copy), multiple of 8,
    #     and >=2 grid steps when possible (megacore on v7x).
    target = min(block_rows, m_rows)
    if m_rows < 2 * target and m_rows >= 16:
        target = min(target, m_rows // 2)
    bm = None
    for cand in range(target, 7, -1):
        if m_rows % cand == 0 and cand % 8 == 0:
            bm = cand
            break
    if bm is None:
        # Fallback only for awkward B*S: 8-aligned tile + row padding.
        bm = max(8, (target // 8) * 8)
        pad = (-m_rows) % bm
        x2 = jnp.pad(x2, ((0, pad), (0, 0)))
    mp = x2.shape[0]
    n_blocks = mp // bm

    x_bytes = x.dtype.itemsize
    c_bytes = jnp.dtype(compute_dtype).itemsize
    vmem_need = (
        2 * bm * D * x_bytes          # input tile, double-buffered
        + 2 * bm * D * x_bytes        # output tile, double-buffered
        + 2 * D * D * c_bytes         # resident W^T (pipeline buffers)
        + bm * D * 4                  # f32 matmul result
    )
    vmem_limit = int(min(max(2 * vmem_need, 16 << 20), 56 << 20))

    kernel = functools.partial(_frequency_layer_kernel, compute_dtype=compute_dtype)

    out2 = pl.pallas_call(
        kernel,
        out_shape=jax.ShapeDtypeStruct((mp, D), x.dtype),
        grid=(n_blocks,),
        in_specs=[
            pl.BlockSpec((bm, D), lambda i: (i, 0)),   # row tile of x
            pl.BlockSpec((D, D), lambda i: (0, 0)),    # W^T (resident)
        ],
        out_specs=pl.BlockSpec((bm, D), lambda i: (i, 0)),
        compiler_params=pltpu.CompilerParams(
            dimension_semantics=("parallel",),
            vmem_limit_bytes=vmem_limit,
        ),
        cost_estimate=pl.CostEstimate(
            flops=2 * m_rows * D * D,
            transcendentals=0,
            bytes_accessed=2 * m_rows * D * x_bytes + D * D * c_bytes,
        ),
    )(x2, wt)

    return out2[:m_rows].reshape(B, S, D)


# ------------------------------- numpy reference --------------------------------

def frequency_layer_reference(x, W):
    """Direct port of the PyTorch module using host numpy FFTs (float64)."""
    xn = np.asarray(x, np.float64)
    Wn = np.asarray(W, np.float64)
    f = np.fft.rfft(xn, axis=1)
    wr = f.real @ Wn.T
    wi = f.imag @ Wn.T
    return np.fft.irfft(wr + 1j * wi, axis=1, n=xn.shape[1])


# ------------------------------------ main ---------------------------------------

if __name__ == "__main__":
    B, S, D = 8, 16, 32               # batch, seq_len, d_model (small demo shapes)

    key = jax.random.PRNGKey(0)
    kx, kw = jax.random.split(key)
    x = jax.random.normal(kx, (B, S, D), jnp.float32)
    W = jax.random.normal(kw, (D, D), jnp.float32)   # torch.randn(d_model, d_model)

    fwd = jax.jit(lambda xx, ww: frequency_layer(xx, ww))
    out = fwd(x, W)
    jax.block_until_ready(out)

    assert out.shape == (B, S, D), out.shape
    assert bool(jnp.all(jnp.isfinite(out)))

    ref = frequency_layer_reference(x, W)
    np.testing.assert_allclose(np.asarray(out), ref, rtol=1e-3, atol=1e-3)

    print("KERNEL_OK")
</pallas_src>

<mosaic_0001>
module attributes {stable_mosaic.version = 11 : i64} {
  func.func @_frequency_layer_kernel(%arg0: i32, %arg1: memref<64x32xf32, #tpu.memory_space<vmem>>, %arg2: memref<32x32xf32, #tpu.memory_space<vmem>>, %arg3: memref<64x32xf32, #tpu.memory_space<vmem>>) attributes {dimension_semantics = [#tpu.dimension_semantics<parallel>], iteration_bounds = array<i64: 2>, scalar_prefetch = 0 : i64, scratch_operands = 0 : i64, tpu.core_type = #tpu.core_type<tc>, window_params = [{transform_indices = @transform_0, window_bounds = array<i64: 64, 32>}, {pipeline_mode = #tpu.pipeline_mode<synchronous>, transform_indices = @transform_1, window_bounds = array<i64: 32, 32>}, {transform_indices = @transform_2, window_bounds = array<i64: 64, 32>}]} {
    %c0 = arith.constant 0 : index
    %c0_0 = arith.constant 0 : index
    %0 = vector.load %arg1[%c0, %c0_0] : memref<64x32xf32, #tpu.memory_space<vmem>>, vector<64x32xf32>
    %c0_1 = arith.constant 0 : index
    %c0_2 = arith.constant 0 : index
    %1 = vector.load %arg2[%c0_1, %c0_2] : memref<32x32xf32, #tpu.memory_space<vmem>>, vector<32x32xf32>
    %cst = arith.constant dense<0.000000e+00> : vector<64x32xf32>
    %2 = tpu.matmul %0, %1, %cst {dimension_numbers = #tpu.dot_dimension_numbers<[1], [0], [0], [1], [0, 0, 1, 1], [], []>} : vector<64x32xf32>, vector<32x32xf32>, vector<64x32xf32> -> vector<64x32xf32>
    %c0_3 = arith.constant 0 : index
    %c0_4 = arith.constant 0 : index
    %3 = vector.load %arg3[%c0_3, %c0_4] : memref<64x32xf32, #tpu.memory_space<vmem>>, vector<64x32xf32>
    tpu.vector_store %arg3[%c0_3, %c0_4], %2 {strides = array<i32>} : memref<64x32xf32, #tpu.memory_space<vmem>>, vector<64x32xf32>,
    return
  }
  func.func @transform_0(%arg0: i32) -> (i32, i32) {
    %c0_i32 = arith.constant 0 : i32
    %c0_i32_0 = arith.constant 0 : i32
    return %arg0, %c0_i32 : i32, i32
  }
  func.func @transform_1(%arg0: i32) -> (i32, i32) {
    %c0_i32 = arith.constant 0 : i32
    %c0_i32_0 = arith.constant 0 : i32
    %c0_i32_1 = arith.constant 0 : i32
    return %c0_i32, %c0_i32_0 : i32, i32
  }
  func.func @transform_2(%arg0: i32) -> (i32, i32) {
    %c0_i32 = arith.constant 0 : i32
    %c0_i32_0 = arith.constant 0 : i32
    return %arg0, %c0_i32 : i32, i32
  }
}

</mosaic_0001>

<llo_original>
// kernel: _lambda_.1
$region0: #{_lambda_.1}
  #allocation0 [shape = 'u32[]', space=smem, size = 0x4, offset = 0x4, fixed_abs, tag = 'smem constant byte address 0x4 - core index']
  #allocation1 [shape = 'u32[72,128]{1,0:T(1,128)}', space=vmem, size = 0x9000, scoped, tag = 'internal scratch']
  %s0 = inlined_call_operand.hbm [shape: f32[128,32], index: 0, kind: input, shape index: {}]
  %s1 = inlined_call_operand.vmem [shape: f32[32,32], index: 1, kind: input, shape index: {}]
  %s2 = inlined_call_operand.hbm [shape: f32[128,32], index: 2, kind: output, shape index: {}]
  %s3 = sld [smem:[#allocation0]]
  $region45: #{_lambda_.1} parent=0
    _
  %s5 = ssub.s32 1, %s3
  %s6 = scalar_select 0, %s5, %s3
  $region1: #{_lambda_.1} parent=0
    #allocation2 [shape = 'u8[65536]{0}', space=vmem, size = 0x10000, scoped, tag = 'input window, operand 0']
    #allocation3 [shape = 's32[2]{0}', space=sflag, size = 0x8, scoped, tag = 'scoped memory for _lambda_.1']
    #allocation4 [shape = 's32[2]{0}', space=sflag, size = 0x8, scoped, tag = 'scoped memory for _lambda_.1']
    #allocation5 [shape = 'u8[65536]{0}', space=vmem, size = 0x10000, scoped, tag = 'output window, operand 0']
    %7 = vsyncpa [#allocation3], 0
    %s8 = scalar_lea.sflag [#allocation3], 1
    %9 = vsyncpa %s8, 0
    %10 = vsyncpa [#allocation4], 0
    %s11 = scalar_lea.sflag [#allocation4], 1
    %12 = vsyncpa %s11, 0
    loop: start=0, step=1, limit=4
    $region2: #{_lambda_.1} parent=1 // loop_pre_header
      _
    $region3: #{_lambda_.1} parent=1 // loop_header
      %s14 = sphi 0, %s18
      %p15 = scmp.ge.s32.totalorder %s14, 4
      %s24 = sphi 0, %s26
      %s27 = sphi 0, %s24
      %s28 = sphi 0, %s27
      %s44 = sphi 0, %s28
      %s48 = sphi 0, %s48
      %s50 = sphi 0, %s48
      %s51 = sphi 0, %s50
      %s65 = sphi 0, %s51
      %s71 = sphi 0, %s73
      %s74 = sphi 0, %s71
      %s75 = sphi 0, %s74
      %s91 = sphi 0, %s75
    $region4: #{_lambda_.1} parent=1 // loop_header_branch
      %17 = sbr.rel (%p15) target = $region8
    $region5: #{_lambda_.1} parent=1 // loop_body
      %s19 = ssub.s32 %s14, 1
      %s20 = ssub.s32 %s14, 2
      %s21 = sadd.s32 %s14, 1
      %s22 = ssub.s32 %s14, %s21
      %p23 = scmp.eq.s32.totalorder %s22, 0
      %s25 = sadd.s32 %s24, 1
      %s26 = scalar_select %p23, %s24, %s25
      %p29 = pneg %p23
      %p30 = scmp.eq.s32.totalorder %s14, 1
      %p31 = por %p29, %p30
      %p32 = scmp.ne.s32.totalorder %s24, %s27
      %p33 = scmp.eq.s32.totalorder %s14, 0
      %p34 = por %p32, %p33
      %p35 = scmp.ne.s32.totalorder %s24, %s27
      %p36 = scmp.eq.s32.totalorder %s19, 1
      %p37 = por %p35, %p36
      %p38 = scmp.ne.s32.totalorder %s27, %s28
      %p39 = scmp.eq.s32.totalorder %s19, 0
      %p40 = por %p38, %p39
      %p41 = scmp.ne.s32.totalorder %s27, %s28
      %p42 = scmp.eq.s32.totalorder %s20, 1
      %p43 = por %p41, %p42
      %p45 = scmp.ne.s32.totalorder %s28, %s44
      %p46 = scmp.eq.s32.totalorder %s20, 0
      %p47 = por %p45, %p46
      %s49 = sadd.s32 %s48, 1
      %p52 = scmp.eq.s32.totalorder %s14, 1
      %p53 = scmp.ne.s32.totalorder %s48, %s50
      %p54 = scmp.eq.s32.totalorder %s14, 0
      %p55 = por %p53, %p54
      %p56 = scmp.ne.s32.totalorder %s48, %s50
      %p57 = scmp.eq.s32.totalorder %s19, 1
      %p58 = por %p56, %p57
      %p59 = scmp.ne.s32.totalorder %s50, %s51
      %p60 = scmp.eq.s32.totalorder %s19, 0
      %p61 = por %p59, %p60
      %p62 = scmp.ne.s32.totalorder %s50, %s51
      %p63 = scmp.eq.s32.totalorder %s20, 1
      %p64 = por %p62, %p63
      %p66 = scmp.ne.s32.totalorder %s51, %s65
      %p67 = scmp.eq.s32.totalorder %s20, 0
      %p68 = por %p66, %p67
      %s69 = ssub.s32 %s14, %s21
      %p70 = scmp.eq.s32.totalorder %s69, 0
      %s72 = sadd.s32 %s71, 1
      %s73 = scalar_select %p70, %s71, %s72
      %p76 = pneg %p70
      %p77 = scmp.eq.s32.totalorder %s14, 1
      %p78 = por %p76, %p77
      %p79 = scmp.ne.s32.totalorder %s71, %s74
      %p80 = scmp.eq.s32.totalorder %s14, 0
      %p81 = por %p79, %p80
      %p82 = scmp.ne.s32.totalorder %s71, %s74
      %p83 = scmp.eq.s32.totalorder %s19, 1
      %p84 = por %p82, %p83
      %p85 = scmp.ne.s32.totalorder %s74, %s75
      %p86 = scmp.eq.s32.totalorder %s19, 0
      %p87 = por %p85, %p86
      %p88 = scmp.ne.s32.totalorder %s74, %s75
      %p89 = scmp.eq.s32.totalorder %s20, 1
      %p90 = por %p88, %p89
      %p92 = scmp.ne.s32.totalorder %s75, %s91
      %p93 = scmp.eq.s32.totalorder %s20, 0
      %p94 = por %p92, %p93
      %p95 = scmp.le.s32.totalorder 1, %s14
      %p96 = scmp.lt.s32.totalorder %s14, 3
      %p97 = pnand %p95, %p96
      %p98 = pneg %p97
      // Predicated region
      $region9: #{_lambda_.1} parent=5 // pred_check
        _
      $region10: #{_lambda_.1} parent=5 // pred_check_branch
        %100 = sbr.rel (%p97) target = $region12
      $region11: #{_lambda_.1} parent=5 // pred_region
        %s101 = ssub.s32 %s14, 1
        // Predicated region
        $region13: #{_lambda_.1} parent=11 // pred_check
          %p102 = pneg %p61
        $region14: #{_lambda_.1} parent=11 // pred_check_branch
          %104 = sbr.rel (%p102) target = $region16
        $region15: #{_lambda_.1} parent=11 // pred_region
          _
        $region16: #{_lambda_.1} parent=11 // pred_fallthru
          _
      $region12: #{_lambda_.1} parent=5 // pred_fallthru
        _
      %p105 = scmp.lt.s32.totalorder %s14, 2
      // Predicated region
      $region17: #{_lambda_.1} parent=5 // pred_check
        %p106 = pneg %p105
      $region18: #{_lambda_.1} parent=5 // pred_check_branch
        %108 = sbr.rel (%p106) target = $region20
      $region19: #{_lambda_.1} parent=5 // pred_region
        // Predicated region
        $region21: #{_lambda_.1} parent=19 // pred_check
          %p109 = pneg %p34
        $region22: #{_lambda_.1} parent=19 // pred_check_branch
          %111 = sbr.rel (%p109) target = $region24
        $region23: #{_lambda_.1} parent=19 // pred_region
          %s112 = sand.u32 %s24, 1
          %s113 = scalar_lea.sflag [#allocation3], %s112
          %s114 = sand.u32 %s24, 1
          %s115 = smul.addr %s114, 64
          %s116 = scalar_lea.vmem [#allocation2], %s115
          %s117 = smul.u32 8, %s14
          %119 = vsyncadd %s113, 0
          %s120 = smul.addr %s117, 8
          %s121 = scalar_lea.hbm %s0, %s120
          %s122 = sshll.u32 %s121, 4
          %s123 = int_to_ptr.hbm [resolvable:$true] %s122
          %s124 = sshll.u32 %s116, 4
          %s125 = int_to_ptr.vmem [resolvable:$true] %s124
          %130 = dma.hbm_to_vmem [thread:$0]  %s123, 1024, %s125, %s113, 128, 128, 8
        $region24: #{_lambda_.1} parent=19 // pred_fallthru
          _
      $region20: #{_lambda_.1} parent=5 // pred_fallthru
        _
      %p131 = scmp.le.s32.totalorder 1, %s14
      %p132 = scmp.lt.s32.totalorder %s14, 3
      %p133 = pnand %p131, %p132
      %p134 = pneg %p133
      // Predicated region
      $region25: #{_lambda_.1} parent=5 // pred_check
        _
      $region26: #{_lambda_.1} parent=5 // pred_check_branch
        %136 = sbr.rel (%p133) target = $region28
      $region27: #{_lambda_.1} parent=5 // pred_region
        %s137 = ssub.s32 %s14, 1
        %s138 = sand.u32 %s27, 1
        %s139 = scalar_lea.sflag [#allocation3], %s138
        %s140 = sand.u32 %s27, 1
        %s141 = smul.addr %s140, 64
        %s142 = scalar_lea.vmem [#allocation2], %s141
        // Predicated region
        $region29: #{_lambda_.1} parent=27 // pred_check
          %p143 = pneg %p40
        $region30: #{_lambda_.1} parent=27 // pred_check_branch
          %145 = sbr.rel (%p143) target = $region32
        $region31: #{_lambda_.1} parent=27 // pred_region
          %147 = dma.done %s139, 1024
        $region32: #{_lambda_.1} parent=27 // pred_fallthru
          _
        %s148 = sand.u32 %s27, 1
        %s149 = scalar_lea.sflag [#allocation3], %s148
        %s150 = sand.u32 %s27, 1
        %s151 = smul.addr %s150, 64
        %s152 = scalar_lea.vmem [#allocation2], %s151
        %p153 = pneg %p40
        %p154 = pneg %p37
        %p155 = pneg %p61
        %p156 = pneg %p58
        %p157 = pneg %p87
        %p158 = pneg %p84
        %s159 = sand.u32 %s74, 1
        %s160 = scalar_lea.sflag [#allocation4], %s159
        %s161 = sand.u32 %s74, 1
        %s162 = smul.addr %s161, 64
        %s163 = scalar_lea.vmem [#allocation5], %s162
        %s164 = smul.u32 8, %s19
        %s165 = smul.u32 8, %s19
        %v166 = vld [vmem:[%s142] sm:$0xff]
        %v167 = vld [vmem:[%s142 + $0x8] sm:$0xff]
        %v168 = vld [vmem:[%s142 + $0x10] sm:$0xff]
        %v169 = vld [vmem:[%s142 + $0x18] sm:$0xff]
        %v170 = vld [vmem:[%s142 + $0x20] sm:$0xff]
        %v171 = vld [vmem:[%s142 + $0x28] sm:$0xff]
        %v172 = vld [vmem:[%s142 + $0x30] sm:$0xff]
        %v173 = vld [vmem:[%s142 + $0x38] sm:$0xff]
        %v174 = vld [vmem:[%s1] sm:$0xff]
        %v175 = vld [vmem:[%s1 + $0x8] sm:$0xff]
        %v176 = vld [vmem:[%s1 + $0x10] sm:$0xff]
        %v177 = vld [vmem:[%s1 + $0x18] sm:$0xff]
        %vm178 = vcmask 261120
        %v180 = vsel %vm178, %v166, 0
        %v183 = vsel %vm178, %v167, 0
        %v186 = vsel %vm178, %v168, 0
        %v189 = vsel %vm178, %v169, 0
        %v192 = vsel %vm178, %v170, 0
        %v195 = vsel %vm178, %v171, 0
        %v198 = vsel %vm178, %v172, 0
        %v201 = vsel %vm178, %v173, 0
        %203 = vmatpush.msra.mxu0 0.0
        %204 = vmatpush.msra.mxu0 0.0
        %205 = vmatpush.msra.mxu0 0.0
        %206 = vmatpush.msra.mxu0 0.0
        %207 = vmatpush.msra.mxu0 0.0
        %208 = vmatpush.msra.mxu0 0.0
        %209 = vmatpush.msra.mxu0 0.0
        %210 = vmatpush.msra.mxu0 0.0
        %211 = vmatpush.msra.mxu0 0.0
        %212 = vmatpush.msra.mxu0 0.0
        %213 = vmatpush.msra.mxu0 0.0
        %214 = vmatpush.msra.mxu0 0.0
        %215 = vmatpush.msra.mxu0 %v177
        %216 = vmatpush.msra.mxu0 %v176
        %217 = vmatpush.msra.mxu0 %v175
        %218 = vmatpush.msra.mxu0 %v174
        %219 = vmatmul.f32.gmra.mxu0 %v180
        %v220 = vpop.f32.mrf.mxu0
        %v221 = vadd.f32 0.0, %v220
        %222 = vmatmul.f32.gmra.mxu0 %v183
        %v223 = vpop.f32.mrf.mxu0
        %v224 = vadd.f32 0.0, %v223
        %225 = vmatmul.f32.gmra.mxu0 %v186
        %v226 = vpop.f32.mrf.mxu0
        %v227 = vadd.f32 0.0, %v226
        %228 = vmatmul.f32.gmra.mxu0 %v189
        %v229 = vpop.f32.mrf.mxu0
        %v230 = vadd.f32 0.0, %v229
        %231 = vmatmul.f32.gmra.mxu0 %v192
        %v232 = vpop.f32.mrf.mxu0
        %v233 = vadd.f32 0.0, %v232
        %234 = vmatmul.f32.gmra.mxu0 %v195
        %v235 = vpop.f32.mrf.mxu0
        %v236 = vadd.f32 0.0, %v235
        %237 = vmatmul.f32.gmra.mxu0 %v198
        %v238 = vpop.f32.mrf.mxu0
        %v239 = vadd.f32 0.0, %v238
        %240 = vmatmul.f32.gmra.mxu0 %v201
        %v241 = vpop.f32.mrf.mxu0
        %v242 = vadd.f32 0.0, %v241
        %243 = vdwg.mxu0
        %244 = vst.msk [vmem:[%s163] sm:$0xff] %vm178, %v221
        %245 = vst.msk [vmem:[%s163 + $0x8] sm:$0xff] %vm178, %v224
        %246 = vst.msk [vmem:[%s163 + $0x10] sm:$0xff] %vm178, %v227
        %247 = vst.msk [vmem:[%s163 + $0x18] sm:$0xff] %vm178, %v230
        %248 = vst.msk [vmem:[%s163 + $0x20] sm:$0xff] %vm178, %v233
        %249 = vst.msk [vmem:[%s163 + $0x28] sm:$0xff] %vm178, %v236
        %250 = vst.msk [vmem:[%s163 + $0x30] sm:$0xff] %vm178, %v239
        %251 = vst.msk [vmem:[%s163 + $0x38] sm:$0xff] %vm178, %v242
        %s252 = sand.u32 %s74, 1
        %s253 = scalar_lea.sflag [#allocation4], %s252
        %s254 = sand.u32 %s74, 1
        %s255 = smul.addr %s254, 64
        %s256 = scalar_lea.vmem [#allocation5], %s255
        // Predicated region
        $region33: #{_lambda_.1} parent=27 // pred_check
          %p257 = pneg %p84
        $region34: #{_lambda_.1} parent=27 // pred_check_branch
          %259 = sbr.rel (%p257) target = $region36
        $region35: #{_lambda_.1} parent=27 // pred_region
          %s260 = smul.u32 8, %s19
          %262 = vsyncadd %s253, 0
          %s263 = smul.addr %s260, 8
          %s264 = scalar_lea.hbm %s2, %s263
          %s265 = sshll.u32 %s256, 4
          %s266 = int_to_ptr.vmem [resolvable:$true] %s265
          %s267 = sshll.u32 %s264, 4
          %s268 = int_to_ptr.hbm [resolvable:$true] %s267
          %273 = dma.vmem_to_hbm [thread:$0]  %s266, 1024, %s268, %s253, 128, 128, 8
        $region36: #{_lambda_.1} parent=27 // pred_fallthru
          _
      $region28: #{_lambda_.1} parent=5 // pred_fallthru
        _
      %p274 = scmp.le.s32.totalorder 2, %s14
      // Predicated region
      $region37: #{_lambda_.1} parent=5 // pred_check
        %p275 = pneg %p274
      $region38: #{_lambda_.1} parent=5 // pred_check_branch
        %277 = sbr.rel (%p275) target = $region40
      $region39: #{_lambda_.1} parent=5 // pred_region
        %s278 = ssub.s32 %s14, 2
        // Predicated region
        $region41: #{_lambda_.1} parent=39 // pred_check
          %p279 = pneg %p90
        $region42: #{_lambda_.1} parent=39 // pred_check_branch
          %281 = sbr.rel (%p279) target = $region44
        $region43: #{_lambda_.1} parent=39 // pred_region
          %s282 = sand.u32 %s75, 1
          %s283 = scalar_lea.sflag [#allocation4], %s282
          %s284 = sand.u32 %s75, 1
          %s285 = smul.addr %s284, 64
          %s286 = scalar_lea.vmem [#allocation5], %s285
          %288 = dma.done %s283, 1024
        $region44: #{_lambda_.1} parent=39 // pred_fallthru
          _
      $region40: #{_lambda_.1} parent=5 // pred_fallthru
        _
    $region6: #{_lambda_.1} parent=1 // loop_footer
      %s18 = sadd.s32 1, %s14
    $region7: #{_lambda_.1} parent=1 // loop_footer_branch
      %13 = sbr.rel target = $region3
    $region8: #{_lambda_.1} parent=1 // loop_exit
      _
    %289 = vsyncpa [#allocation3], 1
    %s290 = scalar_lea.sflag [#allocation3], 1
    %291 = vsyncpa %s290, 1
    %292 = vsyncpa [#allocation4], 1
    %s293 = scalar_lea.sflag [#allocation4], 1
    %294 = vsyncpa %s293, 1

</llo_original>
